<compile_context>
chip_gen: v7x
topology: tpu7x:2x2x1
jax: 0.10.0
libtpu: 0.0.40
codegen_flags: <defaults>
</compile_context>

<pallas_src>
import jax
import jax.numpy as jnp
from jax.experimental import pallas as pl
from jax.experimental.pallas import tpu as pltpu

INPUT_DIM = 64
HIDDEN_DIM = 128


def _pick_chunk(seq_len, max_chunk=16):
    """Largest divisor of seq_len that is <= max_chunk (keeps unroll bounded)."""
    for t in range(min(seq_len, max_chunk), 0, -1):
        if seq_len % t == 0:
            return t
    return 1


def rnn_kernel(x_ref, wih_ref, whh_ref, b_ref, out_ref, h_scratch):
    """One grid step == one chunk of T timesteps.

    x_ref:     (1, T*Bp, INPUT_DIM)   chunk of inputs, time-major rows
    wih_ref:   (INPUT_DIM, HIDDEN)    W_ih^T (resident)
    whh_ref:   (HIDDEN, HIDDEN)       W_hh^T (resident)
    b_ref:     (1, HIDDEN)            bias_ih + bias_hh (resident)
    out_ref:   (Bp, HIDDEN)           final hidden state (written at last chunk)
    h_scratch: (Bp, HIDDEN) f32       recurrent carry across grid iterations
    """
    c = pl.program_id(0)

    bp = h_scratch.shape[0]
    t_steps = x_ref.shape[1] // bp  # static

    @pl.when(c == 0)
    def _():
        h_scratch[...] = jnp.zeros_like(h_scratch)

    # Hoisted input projection for the whole chunk: one MXU-efficient matmul
    # instead of T tiny ones on the serial chain.
    xp = (
        jnp.dot(x_ref[0], wih_ref[...], preferred_element_type=jnp.float32)
        + b_ref[...]
    )  # (T*Bp, HIDDEN)

    whh = whh_ref[...]
    h = h_scratch[...]

    # Serial recurrence over the chunk: only h @ W_hh^T + xp[t] -> tanh.
    # Static Python unroll (T is small) -> static, sublane-aligned slices.
    for t in range(t_steps):
        x_t = xp[t * bp:(t + 1) * bp, :]
        h = jnp.tanh(x_t + jnp.dot(h, whh, preferred_element_type=jnp.float32))

    h_scratch[...] = h

    @pl.when(c == pl.num_programs(0) - 1)
    def _():
        out_ref[...] = h_scratch[...].astype(out_ref.dtype)


def rnn_forward(x, w_ih, b_ih, w_hh, b_hh, *, max_chunk=16):
    """x: (S, B, 64) f32.  Returns final hidden state (B, 128) f32.

    w_ih: (128, 64), b_ih: (128,), w_hh: (128, 128), b_hh: (128,)  (PyTorch
    nn.Linear convention: out_features x in_features).
    """
    S, B, D = x.shape
    assert D == INPUT_DIM

    # Pad batch to the f32 sublane granule (8).
    Bp = max(8, ((B + 7) // 8) * 8)
    T = _pick_chunk(S, max_chunk)
    n_chunks = S // T

    x_pad = x.astype(jnp.float32)
    if Bp != B:
        x_pad = jnp.pad(x_pad, ((0, 0), (0, Bp - B), (0, 0)))
    # (S, Bp, D) -> (n_chunks, T*Bp, D): row (c, t*Bp + b) == x[c*T + t, b].
    x3 = x_pad.reshape(n_chunks, T * Bp, D)

    wih_t = w_ih.T.astype(jnp.float32)                   # (64, 128)
    whh_t = w_hh.T.astype(jnp.float32)                   # (128, 128)
    bias = (b_ih + b_hh).reshape(1, HIDDEN_DIM).astype(jnp.float32)

    out = pl.pallas_call(
        rnn_kernel,
        out_shape=jax.ShapeDtypeStruct((Bp, HIDDEN_DIM), jnp.float32),
        grid_spec=pltpu.PrefetchScalarGridSpec(
            num_scalar_prefetch=0,
            grid=(n_chunks,),
            in_specs=[
                pl.BlockSpec((1, T * Bp, INPUT_DIM), lambda c: (c, 0, 0)),
                pl.BlockSpec((INPUT_DIM, HIDDEN_DIM), lambda c: (0, 0)),
                pl.BlockSpec((HIDDEN_DIM, HIDDEN_DIM), lambda c: (0, 0)),
                pl.BlockSpec((1, HIDDEN_DIM), lambda c: (0, 0)),
            ],
            out_specs=pl.BlockSpec((Bp, HIDDEN_DIM), lambda c: (0, 0)),
            scratch_shapes=[pltpu.VMEM((Bp, HIDDEN_DIM), jnp.float32)],
        ),
        compiler_params=pltpu.CompilerParams(
            dimension_semantics=("arbitrary",),  # time chunks are serial
        ),
    )(x3, wih_t, whh_t, bias)

    return out[:B]


def rnn_reference(x, w_ih, b_ih, w_hh, b_hh):
    """Pure-JAX reference matching the PyTorch module."""
    S, B, _ = x.shape
    h = jnp.zeros((B, HIDDEN_DIM), jnp.float32)
    for t in range(S):
        h = jnp.tanh(x[t] @ w_ih.T + b_ih + h @ w_hh.T + b_hh)
    return h


if __name__ == "__main__":
    key = jax.random.PRNGKey(0)
    k_x, k_wih, k_bih, k_whh, k_bhh = jax.random.split(key, 5)

    S, B = 8, 2
    x = jax.random.normal(k_x, (S, B, INPUT_DIM), jnp.float32)

    # Deterministic parameter init (mimics nn.Linear's uniform(-1/sqrt(in), +)).
    lim_ih = 1.0 / (INPUT_DIM ** 0.5)
    lim_hh = 1.0 / (HIDDEN_DIM ** 0.5)
    w_ih = jax.random.uniform(k_wih, (HIDDEN_DIM, INPUT_DIM), jnp.float32,
                              -lim_ih, lim_ih)
    b_ih = jax.random.uniform(k_bih, (HIDDEN_DIM,), jnp.float32,
                              -lim_ih, lim_ih)
    w_hh = jax.random.uniform(k_whh, (HIDDEN_DIM, HIDDEN_DIM), jnp.float32,
                              -lim_hh, lim_hh)
    b_hh = jax.random.uniform(k_bhh, (HIDDEN_DIM,), jnp.float32,
                              -lim_hh, lim_hh)

    out = rnn_forward(x, w_ih, b_ih, w_hh, b_hh)
    out = jax.block_until_ready(out)

    ref = rnn_reference(x, w_ih, b_ih, w_hh, b_hh)
    assert out.shape == (B, HIDDEN_DIM)
    assert jnp.allclose(out, ref, atol=1e-5, rtol=1e-5), "mismatch vs reference"

    print("KERNEL_OK")
</pallas_src>

<mosaic_0001>
module attributes {stable_mosaic.version = 11 : i64} {
  func.func @rnn_kernel(%arg0: i32, %arg1: memref<1x64x64xf32, #tpu.memory_space<vmem>>, %arg2: memref<64x128xf32, #tpu.memory_space<vmem>>, %arg3: memref<128x128xf32, #tpu.memory_space<vmem>>, %arg4: memref<1x128xf32, #tpu.memory_space<vmem>>, %arg5: memref<8x128xf32, #tpu.memory_space<vmem>>, %arg6: memref<8x128xf32, #tpu.memory_space<vmem>>) attributes {dimension_semantics = [#tpu.dimension_semantics<arbitrary>], iteration_bounds = array<i64: 1>, scalar_prefetch = 0 : i64, scratch_operands = 1 : i64, tpu.core_type = #tpu.core_type<tc>, window_params = [{transform_indices = @transform_0, window_bounds = array<i64: 1, 64, 64>}, {pipeline_mode = #tpu.pipeline_mode<synchronous>, transform_indices = @transform_1, window_bounds = array<i64: 64, 128>}, {pipeline_mode = #tpu.pipeline_mode<synchronous>, transform_indices = @transform_2, window_bounds = array<i64: 128, 128>}, {pipeline_mode = #tpu.pipeline_mode<synchronous>, transform_indices = @transform_3, window_bounds = array<i64: 1, 128>}, {pipeline_mode = #tpu.pipeline_mode<synchronous>, transform_indices = @transform_4, window_bounds = array<i64: 8, 128>}]} {
    %c0_i32 = arith.constant 0 : i32
    %0 = arith.cmpi eq, %arg0, %c0_i32 : i32
    %1 = arith.extui %0 : i1 to i32
    %c0_i32_0 = arith.constant 0 : i32
    %2 = arith.cmpi ne, %1, %c0_i32_0 : i32
    scf.if %2 {
      %cst_23 = arith.constant 0.000000e+00 : f32
      %48 = vector.broadcast %cst_23 : f32 to vector<8x128xf32>
      %c0_24 = arith.constant 0 : index
      %c0_25 = arith.constant 0 : index
      %49 = vector.load %arg6[%c0_24, %c0_25] : memref<8x128xf32, #tpu.memory_space<vmem>>, vector<8x128xf32>
      tpu.vector_store %arg6[%c0_24, %c0_25], %48 {strides = array<i32>} : memref<8x128xf32, #tpu.memory_space<vmem>>, vector<8x128xf32>,
    } else {
    }
    %c0 = arith.constant 0 : index
    %c0_1 = arith.constant 0 : index
    %c0_2 = arith.constant 0 : index
    %3 = vector.load %arg1[%c0, %c0_1, %c0_2] : memref<1x64x64xf32, #tpu.memory_space<vmem>>, vector<1x64x64xf32>
    %4 = vector.shape_cast %3 : vector<1x64x64xf32> to vector<64x64xf32>
    %c0_3 = arith.constant 0 : index
    %c0_4 = arith.constant 0 : index
    %5 = vector.load %arg2[%c0_3, %c0_4] : memref<64x128xf32, #tpu.memory_space<vmem>>, vector<64x128xf32>
    %cst = arith.constant dense<0.000000e+00> : vector<64x128xf32>
    %6 = tpu.matmul %4, %5, %cst {dimension_numbers = #tpu.dot_dimension_numbers<[1], [0], [0], [1], [0, 0, 1, 1], [], []>} : vector<64x64xf32>, vector<64x128xf32>, vector<64x128xf32> -> vector<64x128xf32>
    %c0_5 = arith.constant 0 : index
    %c0_6 = arith.constant 0 : index
    %7 = vector.load %arg4[%c0_5, %c0_6] : memref<1x128xf32, #tpu.memory_space<vmem>>, vector<1x128xf32>
    %8 = vector.broadcast %7 : vector<1x128xf32> to vector<64x128xf32>
    %9 = arith.addf %6, %8 : vector<64x128xf32>
    %c0_7 = arith.constant 0 : index
    %c0_8 = arith.constant 0 : index
    %10 = vector.load %arg3[%c0_7, %c0_8] : memref<128x128xf32, #tpu.memory_space<vmem>>, vector<128x128xf32>
    %c0_9 = arith.constant 0 : index
    %c0_10 = arith.constant 0 : index
    %11 = vector.load %arg6[%c0_9, %c0_10] : memref<8x128xf32, #tpu.memory_space<vmem>>, vector<8x128xf32>
    %12 = vector.extract_strided_slice %9 {offsets = [0, 0], sizes = [8, 128], strides = [1, 1]} : vector<64x128xf32> to vector<8x128xf32>
    %cst_11 = arith.constant dense<0.000000e+00> : vector<8x128xf32>
    %13 = tpu.matmul %11, %10, %cst_11 {dimension_numbers = #tpu.dot_dimension_numbers<[1], [0], [0], [1], [0, 0, 1, 1], [], []>} : vector<8x128xf32>, vector<128x128xf32>, vector<8x128xf32> -> vector<8x128xf32>
    %14 = arith.addf %12, %13 : vector<8x128xf32>
    %15 = math.tanh %14 : vector<8x128xf32>
    %16 = vector.extract_strided_slice %9 {offsets = [8, 0], sizes = [8, 128], strides = [1, 1]} : vector<64x128xf32> to vector<8x128xf32>
    %cst_12 = arith.constant dense<0.000000e+00> : vector<8x128xf32>
    %17 = tpu.matmul %15, %10, %cst_12 {dimension_numbers = #tpu.dot_dimension_numbers<[1], [0], [0], [1], [0, 0, 1, 1], [], []>} : vector<8x128xf32>, vector<128x128xf32>, vector<8x128xf32> -> vector<8x128xf32>
    %18 = arith.addf %16, %17 : vector<8x128xf32>
    %19 = math.tanh %18 : vector<8x128xf32>
    %20 = vector.extract_strided_slice %9 {offsets = [16, 0], sizes = [8, 128], strides = [1, 1]} : vector<64x128xf32> to vector<8x128xf32>
    %cst_13 = arith.constant dense<0.000000e+00> : vector<8x128xf32>
    %21 = tpu.matmul %19, %10, %cst_13 {dimension_numbers = #tpu.dot_dimension_numbers<[1], [0], [0], [1], [0, 0, 1, 1], [], []>} : vector<8x128xf32>, vector<128x128xf32>, vector<8x128xf32> -> vector<8x128xf32>
    %22 = arith.addf %20, %21 : vector<8x128xf32>
    %23 = math.tanh %22 : vector<8x128xf32>
    %24 = vector.extract_strided_slice %9 {offsets = [24, 0], sizes = [8, 128], strides = [1, 1]} : vector<64x128xf32> to vector<8x128xf32>
    %cst_14 = arith.constant dense<0.000000e+00> : vector<8x128xf32>
    %25 = tpu.matmul %23, %10, %cst_14 {dimension_numbers = #tpu.dot_dimension_numbers<[1], [0], [0], [1], [0, 0, 1, 1], [], []>} : vector<8x128xf32>, vector<128x128xf32>, vector<8x128xf32> -> vector<8x128xf32>
    %26 = arith.addf %24, %25 : vector<8x128xf32>
    %27 = math.tanh %26 : vector<8x128xf32>
    %28 = vector.extract_strided_slice %9 {offsets = [32, 0], sizes = [8, 128], strides = [1, 1]} : vector<64x128xf32> to vector<8x128xf32>
    %cst_15 = arith.constant dense<0.000000e+00> : vector<8x128xf32>
    %29 = tpu.matmul %27, %10, %cst_15 {dimension_numbers = #tpu.dot_dimension_numbers<[1], [0], [0], [1], [0, 0, 1, 1], [], []>} : vector<8x128xf32>, vector<128x128xf32>, vector<8x128xf32> -> vector<8x128xf32>
    %30 = arith.addf %28, %29 : vector<8x128xf32>
    %31 = math.tanh %30 : vector<8x128xf32>
    %32 = vector.extract_strided_slice %9 {offsets = [40, 0], sizes = [8, 128], strides = [1, 1]} : vector<64x128xf32> to vector<8x128xf32>
    %cst_16 = arith.constant dense<0.000000e+00> : vector<8x128xf32>
    %33 = tpu.matmul %31, %10, %cst_16 {dimension_numbers = #tpu.dot_dimension_numbers<[1], [0], [0], [1], [0, 0, 1, 1], [], []>} : vector<8x128xf32>, vector<128x128xf32>, vector<8x128xf32> -> vector<8x128xf32>
    %34 = arith.addf %32, %33 : vector<8x128xf32>
    %35 = math.tanh %34 : vector<8x128xf32>
    %36 = vector.extract_strided_slice %9 {offsets = [48, 0], sizes = [8, 128], strides = [1, 1]} : vector<64x128xf32> to vector<8x128xf32>
    %cst_17 = arith.constant dense<0.000000e+00> : vector<8x128xf32>
    %37 = tpu.matmul %35, %10, %cst_17 {dimension_numbers = #tpu.dot_dimension_numbers<[1], [0], [0], [1], [0, 0, 1, 1], [], []>} : vector<8x128xf32>, vector<128x128xf32>, vector<8x128xf32> -> vector<8x128xf32>
    %38 = arith.addf %36, %37 : vector<8x128xf32>
    %39 = math.tanh %38 : vector<8x128xf32>
    %40 = vector.extract_strided_slice %9 {offsets = [56, 0], sizes = [8, 128], strides = [1, 1]} : vector<64x128xf32> to vector<8x128xf32>
    %cst_18 = arith.constant dense<0.000000e+00> : vector<8x128xf32>
    %41 = tpu.matmul %39, %10, %cst_18 {dimension_numbers = #tpu.dot_dimension_numbers<[1], [0], [0], [1], [0, 0, 1, 1], [], []>} : vector<8x128xf32>, vector<128x128xf32>, vector<8x128xf32> -> vector<8x128xf32>
    %42 = arith.addf %40, %41 : vector<8x128xf32>
    %43 = math.tanh %42 : vector<8x128xf32>
    %c0_19 = arith.constant 0 : index
    %c0_20 = arith.constant 0 : index
    %44 = vector.load %arg6[%c0_19, %c0_20] : memref<8x128xf32, #tpu.memory_space<vmem>>, vector<8x128xf32>
    tpu.vector_store %arg6[%c0_19, %c0_20], %43 {strides = array<i32>} : memref<8x128xf32, #tpu.memory_space<vmem>>, vector<8x128xf32>,
    %c0_i32_21 = arith.constant 0 : i32
    %45 = arith.cmpi eq, %arg0, %c0_i32_21 : i32
    %46 = arith.extui %45 : i1 to i32
    %c0_i32_22 = arith.constant 0 : i32
    %47 = arith.cmpi ne, %46, %c0_i32_22 : i32
    scf.if %47 {
      %c0_23 = arith.constant 0 : index
      %c0_24 = arith.constant 0 : index
      %48 = vector.load %arg6[%c0_23, %c0_24] : memref<8x128xf32, #tpu.memory_space<vmem>>, vector<8x128xf32>
      %c0_25 = arith.constant 0 : index
      %c0_26 = arith.constant 0 : index
      %49 = vector.load %arg5[%c0_25, %c0_26] : memref<8x128xf32, #tpu.memory_space<vmem>>, vector<8x128xf32>
      tpu.vector_store %arg5[%c0_25, %c0_26], %48 {strides = array<i32>} : memref<8x128xf32, #tpu.memory_space<vmem>>, vector<8x128xf32>,
    } else {
    }
    return
  }
  func.func @transform_0(%arg0: i32) -> (i32, i32, i32) {
    %c0_i32 = arith.constant 0 : i32
    %c0_i32_0 = arith.constant 0 : i32
    %c0_i32_1 = arith.constant 0 : i32
    return %arg0, %c0_i32, %c0_i32_0 : i32, i32, i32
  }
  func.func @transform_1(%arg0: i32) -> (i32, i32) {
    %c0_i32 = arith.constant 0 : i32
    %c0_i32_0 = arith.constant 0 : i32
    %c0_i32_1 = arith.constant 0 : i32
    return %c0_i32, %c0_i32_0 : i32, i32
  }
  func.func @transform_2(%arg0: i32) -> (i32, i32) {
    %c0_i32 = arith.constant 0 : i32
    %c0_i32_0 = arith.constant 0 : i32
    %c0_i32_1 = arith.constant 0 : i32
    return %c0_i32, %c0_i32_0 : i32, i32
  }
  func.func @transform_3(%arg0: i32) -> (i32, i32) {
    %c0_i32 = arith.constant 0 : i32
    %c0_i32_0 = arith.constant 0 : i32
    %c0_i32_1 = arith.constant 0 : i32
    return %c0_i32, %c0_i32_0 : i32, i32
  }
  func.func @transform_4(%arg0: i32) -> (i32, i32) {
    %c0_i32 = arith.constant 0 : i32
    %c0_i32_0 = arith.constant 0 : i32
    %c0_i32_1 = arith.constant 0 : i32
    return %c0_i32, %c0_i32_0 : i32, i32
  }
}

</mosaic_0001>

<llo_original>
// kernel: tpu_custom_call.1
$region0: #{tpu_custom_call.1}
  #allocation0 [shape = 'u32[]', space=smem, size = 0x4, offset = 0x4, fixed_abs, tag = 'smem constant byte address 0x4 - core index']
  #allocation1 [shape = 'u32[144,128]{1,0:T(1,128)}', space=vmem, size = 0x12000, scoped, tag = 'internal scratch']
  #allocation2 [shape = 'f32[8,128]{1,0:T(8,128)}', space=vmem, size = 0x1000, scoped, tag = 'scratch operand']
  %s0 = inlined_call_operand.hbm [shape: f32[1,64,64], index: 0, kind: input, shape index: {}]
  %s1 = inlined_call_operand.hbm [shape: f32[64,128], index: 1, kind: input, shape index: {}]
  %s2 = inlined_call_operand.hbm [shape: f32[128,128], index: 2, kind: input, shape index: {}]
  %s3 = inlined_call_operand.vmem [shape: f32[1,128], index: 3, kind: input, shape index: {}]
  %s4 = inlined_call_operand.hbm [shape: f32[8,128], index: 4, kind: output, shape index: {}]
  %s5 = sld [smem:[#allocation0]]
  $region46: #{tpu_custom_call.1} parent=0
    _
  %s7 = ssub.s32 1, %s5
  %s8 = scalar_select 0, %s7, %s5
  $region1: #{tpu_custom_call.1} parent=0
    #allocation3 [shape = 'u8[32768]{0}', space=vmem, size = 0x8000, scoped, tag = 'input window, operand 0, single buffered']
    #allocation4 [shape = 's32[1]{0}', space=sflag, size = 0x4, scoped, tag = 'scoped memory for tpu_custom_call.1']
    #allocation5 [shape = 's32[1]{0}', space=sflag, size = 0x4, scoped, tag = 'scoped memory for tpu_custom_call.1']
    #allocation6 [shape = 'u8[32768]{0}', space=vmem, size = 0x8000, scoped, tag = 'input window, operand 1, single buffered']
    #allocation7 [shape = 's32[1]{0}', space=sflag, size = 0x4, scoped, tag = 'scoped memory for tpu_custom_call.1']
    #allocation8 [shape = 'u8[65536]{0}', space=vmem, size = 0x10000, scoped, tag = 'input window, operand 2, single buffered']
    #allocation9 [shape = 'u8[4096]{0}', space=vmem, size = 0x1000, scoped, tag = 'output window, operand 0, single buffered']
    %9 = vsyncpa [#allocation4], 0
    %10 = vsyncpa [#allocation7], 0
    %11 = vsyncpa [#allocation5], 0
    // Predicated region
    $region2: #{tpu_custom_call.1} parent=1 // pred_check
      _
    $region3: #{tpu_custom_call.1} parent=1 // pred_check_branch
      %13 = sbr.rel (0) target = $region5
    $region4: #{tpu_custom_call.1} parent=1 // pred_region
      %s15 = ssub.s32 1024, 1024
      %16 = vsyncadd [#allocation4], %s15
      %s17 = sshll.u32 [#allocation3], 4
      %s18 = int_to_ptr.vmem [resolvable:$true] %s17
      %23 = dma.hbm_to_vmem [thread:$0]  %s0, 1024, %s18, [#allocation4], 128, 128, 8
    $region5: #{tpu_custom_call.1} parent=1 // pred_fallthru
      _
    // Predicated region
    $region6: #{tpu_custom_call.1} parent=1 // pred_check
      _
    $region7: #{tpu_custom_call.1} parent=1 // pred_check_branch
      %25 = sbr.rel (0) target = $region9
    $region8: #{tpu_custom_call.1} parent=1 // pred_region
      %s27 = ssub.s32 1024, 1024
      %28 = vsyncadd [#allocation7], %s27
      %s29 = sshll.u32 [#allocation6], 4
      %s30 = int_to_ptr.vmem [resolvable:$true] %s29
      %35 = dma.hbm_to_vmem [thread:$0]  %s1, 1024, %s30, [#allocation7], 128, 128, 8
    $region9: #{tpu_custom_call.1} parent=1 // pred_fallthru
      _
    // Predicated region
    $region10: #{tpu_custom_call.1} parent=1 // pred_check
      _
    $region11: #{tpu_custom_call.1} parent=1 // pred_check_branch
      %37 = sbr.rel (0) target = $region13
    $region12: #{tpu_custom_call.1} parent=1 // pred_region
      %s39 = ssub.s32 2048, 2048
      %40 = vsyncadd [#allocation7], %s39
      %s41 = sshll.u32 [#allocation8], 4
      %s42 = int_to_ptr.vmem [resolvable:$true] %s41
      %47 = dma.hbm_to_vmem [thread:$0]  %s2, 2048, %s42, [#allocation7], 128, 128, 8
    $region13: #{tpu_custom_call.1} parent=1 // pred_fallthru
      _
    // Predicated region
    $region14: #{tpu_custom_call.1} parent=1 // pred_check
      _
    $region15: #{tpu_custom_call.1} parent=1 // pred_check_branch
      %49 = sbr.rel (0) target = $region17
    $region16: #{tpu_custom_call.1} parent=1 // pred_region
      _
    $region17: #{tpu_custom_call.1} parent=1 // pred_fallthru
      _
    // Predicated region
    $region18: #{tpu_custom_call.1} parent=1 // pred_check
      _
    $region19: #{tpu_custom_call.1} parent=1 // pred_check_branch
      %51 = sbr.rel (0) target = $region21
    $region20: #{tpu_custom_call.1} parent=1 // pred_region
      %52 = dma.done [#allocation4], 1024
    $region21: #{tpu_custom_call.1} parent=1 // pred_fallthru
      _
    // Predicated region
    $region22: #{tpu_custom_call.1} parent=1 // pred_check
      _
    $region23: #{tpu_custom_call.1} parent=1 // pred_check_branch
      %54 = sbr.rel (0) target = $region25
    $region24: #{tpu_custom_call.1} parent=1 // pred_region
      %55 = dma.done [#allocation7], 1024
    $region25: #{tpu_custom_call.1} parent=1 // pred_fallthru
      _
    // Predicated region
    $region26: #{tpu_custom_call.1} parent=1 // pred_check
      _
    $region27: #{tpu_custom_call.1} parent=1 // pred_check_branch
      %57 = sbr.rel (0) target = $region29
    $region28: #{tpu_custom_call.1} parent=1 // pred_region
      %58 = dma.done [#allocation7], 2048
    $region29: #{tpu_custom_call.1} parent=1 // pred_fallthru
      _
    %p59 = scmp.eq.s32.totalorder 0, 0
    // Predicated region
    $region30: #{tpu_custom_call.1} parent=1 // pred_check
      %p60 = pneg %p59
    $region31: #{tpu_custom_call.1} parent=1 // pred_check_branch
      %62 = sbr.rel (%p60) target = $region33
    $region32: #{tpu_custom_call.1} parent=1 // pred_region
      %63 = vst [vmem:[#allocation2] sm:$0xff] 0.0
    $region33: #{tpu_custom_call.1} parent=1 // pred_fallthru
      _
    %v64 = vld [vmem:[#allocation3] sm:$0xff]
    %v65 = vld [vmem:[#allocation3 + $0x8] sm:$0xff]
    %v66 = vld [vmem:[#allocation3 + $0x10] sm:$0xff]
    %v67 = vld [vmem:[#allocation3 + $0x18] sm:$0xff]
    %v68 = vld [vmem:[#allocation3 + $0x20] sm:$0xff]
    %v69 = vld [vmem:[#allocation3 + $0x28] sm:$0xff]
    %v70 = vld [vmem:[#allocation3 + $0x30] sm:$0xff]
    %v71 = vld [vmem:[#allocation3 + $0x38] sm:$0xff]
    %v72 = vld [vmem:[#allocation6] sm:$0xff]
    %v73 = vld [vmem:[#allocation6 + $0x8] sm:$0xff]
    %v74 = vld [vmem:[#allocation6 + $0x10] sm:$0xff]
    %v75 = vld [vmem:[#allocation6 + $0x18] sm:$0xff]
    %v76 = vld [vmem:[#allocation6 + $0x20] sm:$0xff]
    %v77 = vld [vmem:[#allocation6 + $0x28] sm:$0xff]
    %v78 = vld [vmem:[#allocation6 + $0x30] sm:$0xff]
    %v79 = vld [vmem:[#allocation6 + $0x38] sm:$0xff]
    %v80 = vld [vmem:[%s3] sm:$0x1]
    %v82 = vlaneseq
    %v83 = vshrl.u32 %v82, 7
    %v84 = vsub.s32 0, %v83
    %v85 = vrot.slane %v80, %v84
    %vm87 = vcmask 523264
    %v89 = vsel %vm87, %v64, 0
    %v92 = vsel %vm87, %v65, 0
    %v95 = vsel %vm87, %v66, 0
    %v98 = vsel %vm87, %v67, 0
    %v101 = vsel %vm87, %v68, 0
    %v104 = vsel %vm87, %v69, 0
    %v107 = vsel %vm87, %v70, 0
    %v110 = vsel %vm87, %v71, 0
    %112 = vmatprep.subr.mxu0 0.0
    %113 = vmatpush1.msra.mxu0 %v72
    %114 = vmatprep.subr.mxu0 0.0
    %115 = vmatpush1.msra.mxu0 %v73
    %116 = vmatprep.subr.mxu0 0.0
    %117 = vmatpush1.msra.mxu0 %v74
    %118 = vmatprep.subr.mxu0 0.0
    %119 = vmatpush1.msra.mxu0 %v75
    %120 = vmatprep.subr.mxu0 0.0
    %121 = vmatpush1.msra.mxu0 %v76
    %122 = vmatprep.subr.mxu0 0.0
    %123 = vmatpush1.msra.mxu0 %v77
    %124 = vmatprep.subr.mxu0 0.0
    %125 = vmatpush1.msra.mxu0 %v78
    %126 = vmatprep.subr.mxu0 0.0
    %127 = vmatpush1.msra.mxu0 %v79
    %128 = vmatprep.subr.mxu0 0.0
    %129 = vmatpush1.msra.mxu0 0.0
    %130 = vmatprep.subr.mxu0 0.0
    %131 = vmatpush1.msra.mxu0 0.0
    %132 = vmatprep.subr.mxu0 0.0
    %133 = vmatpush1.msra.mxu0 0.0
    %134 = vmatprep.subr.mxu0 0.0
    %135 = vmatpush1.msra.mxu0 0.0
    %136 = vmatprep.subr.mxu0 0.0
    %137 = vmatpush1.msra.mxu0 0.0
    %138 = vmatprep.subr.mxu0 0.0
    %139 = vmatpush1.msra.mxu0 0.0
    %140 = vmatprep.subr.mxu0 0.0
    %141 = vmatpush1.msra.mxu0 0.0
    %142 = vmatprep.subr.mxu0 0.0
    %143 = vmatpush1.msra.mxu0 0.0
    %144 = vmatprep.subr.mxu0 0.0
    %145 = vmatpush1.msra.mxu0 0.0
    %146 = vmatprep.subr.mxu0 0.0
    %147 = vmatpush1.msra.mxu0 0.0
    %148 = vmatprep.subr.mxu0 0.0
    %149 = vmatpush1.msra.mxu0 0.0
    %150 = vmatprep.subr.mxu0 0.0
    %151 = vmatpush1.msra.mxu0 0.0
    %152 = vmatprep.subr.mxu0 0.0
    %153 = vmatpush1.msra.mxu0 0.0
    %154 = vmatprep.subr.mxu0 0.0
    %155 = vmatpush1.msra.mxu0 0.0
    %156 = vmatprep.subr.mxu0 0.0
    %157 = vmatpush1.msra.mxu0 0.0
    %158 = vmatprep.subr.mxu0 0.0
    %159 = vmatpush1.msra.mxu0 0.0
    %160 = vmatprep.subr.mxu0 0.0
    %161 = vmatpush1.msra.mxu0 0.0
    %162 = vmatprep.subr.mxu0 0.0
    %163 = vmatpush1.msra.mxu0 0.0
    %164 = vmatprep.subr.mxu0 0.0
    %165 = vmatpush1.msra.mxu0 0.0
    %166 = vmatprep.subr.mxu0 0.0
    %167 = vmatpush1.msra.mxu0 0.0
    %168 = vmatprep.subr.mxu0 0.0
    %169 = vmatpush1.msra.mxu0 0.0
    %170 = vmatprep.subr.mxu0 0.0
    %171 = vmatpush1.msra.mxu0 0.0
    %172 = vmatprep.subr.mxu0 0.0
    %173 = vmatpush1.msra.mxu0 0.0
    %174 = vmatprep.subr.mxu0 0.0
    %175 = vmatpush1.msra.mxu0 0.0
    %176 = vmatprep.mubr.f32.mxu0 0.0
    %177 = vmatmul.mubr.f32.gmra.mrb[0].mxu0 %v89
    %v178 = vpop.f32.mrb[0].mxu0
    %v179 = vadd.f32 %v85, %v178
    %v180 = vpop.f32.mrb[0].mxu0
    %181 = vmatprep.mubr.f32.mxu0 0.0
    %182 = vmatmul.mubr.f32.gmra.mrb[0].mxu0 %v92
    %v183 = vpop.f32.mrb[0].mxu0
    %v184 = vadd.f32 %v85, %v183
    %v185 = vpop.f32.mrb[0].mxu0
    %186 = vmatprep.mubr.f32.mxu0 0.0
    %187 = vmatmul.mubr.f32.gmra.mrb[0].mxu0 %v95
    %v188 = vpop.f32.mrb[0].mxu0
    %v189 = vadd.f32 %v85, %v188
    %v190 = vpop.f32.mrb[0].mxu0
    %191 = vmatprep.mubr.f32.mxu0 0.0
    %192 = vmatmul.mubr.f32.gmra.mrb[0].mxu0 %v98
    %v193 = vpop.f32.mrb[0].mxu0
    %v194 = vadd.f32 %v85, %v193
    %v195 = vpop.f32.mrb[0].mxu0
    %196 = vmatprep.mubr.f32.mxu0 0.0
    %197 = vmatmul.mubr.f32.gmra.mrb[0].mxu0 %v101
    %v198 = vpop.f32.mrb[0].mxu0
    %v199 = vadd.f32 %v85, %v198
    %v200 = vpop.f32.mrb[0].mxu0
    %201 = vmatprep.mubr.f32.mxu0 0.0
    %202 = vmatmul.mubr.f32.gmra.mrb[0].mxu0 %v104
    %v203 = vpop.f32.mrb[0].mxu0
    %v204 = vadd.f32 %v85, %v203
    %v205 = vpop.f32.mrb[0].mxu0
    %206 = vmatprep.mubr.f32.mxu0 0.0
    %207 = vmatmul.mubr.f32.gmra.mrb[0].mxu0 %v107
    %v208 = vpop.f32.mrb[0].mxu0
    %v209 = vadd.f32 %v85, %v208
    %v210 = vpop.f32.mrb[0].mxu0
    %211 = vmatprep.mubr.f32.mxu0 0.0
    %212 = vmatmul.mubr.f32.gmra.mrb[0].mxu0 %v110
    %v213 = vpop.f32.mrb[0].mxu0
    %v214 = vadd.f32 %v85, %v213
    %v215 = vpop.f32.mrb[0].mxu0
    %216 = vdwg.mxu0
    %v217 = vld [vmem:[#allocation8] sm:$0xff]
    %v218 = vld [vmem:[#allocation8 + $0x8] sm:$0xff]
    %v219 = vld [vmem:[#allocation8 + $0x10] sm:$0xff]
    %v220 = vld [vmem:[#allocation8 + $0x18] sm:$0xff]
    %v221 = vld [vmem:[#allocation8 + $0x20] sm:$0xff]
    %v222 = vld [vmem:[#allocation8 + $0x28] sm:$0xff]
    %v223 = vld [vmem:[#allocation8 + $0x30] sm:$0xff]
    %v224 = vld [vmem:[#allocation8 + $0x38] sm:$0xff]
    %v225 = vld [vmem:[#allocation8 + $0x40] sm:$0xff]
    %v226 = vld [vmem:[#allocation8 + $0x48] sm:$0xff]
    %v227 = vld [vmem:[#allocation8 + $0x50] sm:$0xff]
    %v228 = vld [vmem:[#allocation8 + $0x58] sm:$0xff]
    %v229 = vld [vmem:[#allocation8 + $0x60] sm:$0xff]
    %v230 = vld [vmem:[#allocation8 + $0x68] sm:$0xff]
    %v231 = vld [vmem:[#allocation8 + $0x70] sm:$0xff]
    %v232 = vld [vmem:[#allocation8 + $0x78] sm:$0xff]
    %v233 = vld [vmem:[#allocation2] sm:$0xff]
    %234 = vmatprep.subr.mxu0 0.0
    %235 = vmatpush1.msra.mxu0 %v217
    %236 = vmatprep.subr.mxu0 0.0
    %237 = vmatpush1.msra.mxu0 %v218
    %238 = vmatprep.subr.mxu0 0.0
    %239 = vmatpush1.msra.mxu0 %v219
    %240 = vmatprep.subr.mxu0 0.0
    %241 = vmatpush1.msra.mxu0 %v220
    %242 = vmatprep.subr.mxu0 0.0
    %243 = vmatpush1.msra.mxu0 %v221
    %244 = vmatprep.subr.mxu0 0.0
    %245 = vmatpush1.msra.mxu0 %v222
    %246 = vmatprep.subr.mxu0 0.0
    %247 = vmatpush1.msra.mxu0 %v223
    %248 = vmatprep.subr.mxu0 0.0
    %249 = vmatpush1.msra.mxu0 %v224
    %250 = vmatprep.subr.mxu0 0.0
    %251 = vmatpush1.msra.mxu0 %v225
    %252 = vmatprep.subr.mxu0 0.0
    %253 = vmatpush1.msra.mxu0 %v226
    %254 = vmatprep.subr.mxu0 0.0
    %255 = vmatpush1.msra.mxu0 %v227
    %256 = vmatprep.subr.mxu0 0.0
    %257 = vmatpush1.msra.mxu0 %v228
    %258 = vmatprep.subr.mxu0 0.0
    %259 = vmatpush1.msra.mxu0 %v229
    %260 = vmatprep.subr.mxu0 0.0
    %261 = vmatpush1.msra.mxu0 %v230
    %262 = vmatprep.subr.mxu0 0.0
    %263 = vmatpush1.msra.mxu0 %v231
    %264 = vmatprep.subr.mxu0 0.0
    %265 = vmatpush1.msra.mxu0 %v232
    %266 = vmatprep.subr.mxu0 0.0
    %267 = vmatpush1.msra.mxu0 0.0
    %268 = vmatprep.subr.mxu0 0.0
    %269 = vmatpush1.msra.mxu0 0.0
    %270 = vmatprep.subr.mxu0 0.0
    %271 = vmatpush1.msra.mxu0 0.0
    %272 = vmatprep.subr.mxu0 0.0
    %273 = vmatpush1.msra.mxu0 0.0
    %274 = vmatprep.subr.mxu0 0.0
    %275 = vmatpush1.msra.mxu0 0.0
    %276 = vmatprep.subr.mxu0 0.0
    %277 = vmatpush1.msra.mxu0 0.0
    %278 = vmatprep.subr.mxu0 0.0
    %279 = vmatpush1.msra.mxu0 0.0
    %280 = vmatprep.subr.mxu0 0.0
    %281 = vmatpush1.msra.mxu0 0.0
    %282 = vmatprep.subr.mxu0 0.0
    %283 = vmatpush1.msra.mxu0 0.0
    %284 = vmatprep.subr.mxu0 0.0
    %285 = vmatpush1.msra.mxu0 0.0
    %286 = vmatprep.subr.mxu0 0.0
    %287 = vmatpush1.msra.mxu0 0.0
    %288 = vmatprep.subr.mxu0 0.0
    %289 = vmatpush1.msra.mxu0 0.0
    %290 = vmatprep.subr.mxu0 0.0
    %291 = vmatpush1.msra.mxu0 0.0
    %292 = vmatprep.subr.mxu0 0.0
    %293 = vmatpush1.msra.mxu0 0.0
    %294 = vmatprep.subr.mxu0 0.0
    %295 = vmatpush1.msra.mxu0 0.0
    %296 = vmatprep.subr.mxu0 0.0
    %297 = vmatpush1.msra.mxu0 0.0
    %298 = vmatprep.mubr.f32.mxu0 0.0
    %299 = vmatmul.mubr.f32.gmra.mrb[0].mxu0 %v233
    %v300 = vpop.f32.mrb[0].mxu0
    %v301 = vadd.f32 0.0, %v300
    %v302 = vpop.f32.mrb[0].mxu0
    %303 = vdwg.mxu0
    %v304 = vadd.f32 %v179, %v301
    %v305 = vtanh.pop %v304
    %306 = vmatprep.subr.mxu0 0.0
    %307 = vmatpush1.msra.mxu0 %v217
    %308 = vmatprep.subr.mxu0 0.0
    %309 = vmatpush1.msra.mxu0 %v218
    %310 = vmatprep.subr.mxu0 0.0
    %311 = vmatpush1.msra.mxu0 %v219
    %312 = vmatprep.subr.mxu0 0.0
    %313 = vmatpush1.msra.mxu0 %v220
    %314 = vmatprep.subr.mxu0 0.0
    %315 = vmatpush1.msra.mxu0 %v221
    %316 = vmatprep.subr.mxu0 0.0
    %317 = vmatpush1.msra.mxu0 %v222
    %318 = vmatprep.subr.mxu0 0.0
    %319 = vmatpush1.msra.mxu0 %v223
    %320 = vmatprep.subr.mxu0 0.0
    %321 = vmatpush1.msra.mxu0 %v224
    %322 = vmatprep.subr.mxu0 0.0
    %323 = vmatpush1.msra.mxu0 %v225
    %324 = vmatprep.subr.mxu0 0.0
    %325 = vmatpush1.msra.mxu0 %v226
    %326 = vmatprep.subr.mxu0 0.0
    %327 = vmatpush1.msra.mxu0 %v227
    %328 = vmatprep.subr.mxu0 0.0
    %329 = vmatpush1.msra.mxu0 %v228
    %330 = vmatprep.subr.mxu0 0.0
    %331 = vmatpush1.msra.mxu0 %v229
    %332 = vmatprep.subr.mxu0 0.0
    %333 = vmatpush1.msra.mxu0 %v230
    %334 = vmatprep.subr.mxu0 0.0
    %335 = vmatpush1.msra.mxu0 %v231
    %336 = vmatprep.subr.mxu0 0.0
    %337 = vmatpush1.msra.mxu0 %v232
    %338 = vmatprep.subr.mxu0 0.0
    %339 = vmatpush1.msra.mxu0 0.0
    %340 = vmatprep.subr.mxu0 0.0
    %341 = vmatpush1.msra.mxu0 0.0
    %342 = vmatprep.subr.mxu0 0.0
    %343 = vmatpush1.msra.mxu0 0.0
    %344 = vmatprep.subr.mxu0 0.0
    %345 = vmatpush1.msra.mxu0 0.0
    %346 = vmatprep.subr.mxu0 0.0
    %347 = vmatpush1.msra.mxu0 0.0
    %348 = vmatprep.subr.mxu0 0.0
    %349 = vmatpush1.msra.mxu0 0.0
    %350 = vmatprep.subr.mxu0 0.0
    %351 = vmatpush1.msra.mxu0 0.0
    %352 = vmatprep.subr.mxu0 0.0
    %353 = vmatpush1.msra.mxu0 0.0
    %354 = vmatprep.subr.mxu0 0.0
    %355 = vmatpush1.msra.mxu0 0.0
    %356 = vmatprep.subr.mxu0 0.0
    %357 = vmatpush1.msra.mxu0 0.0
    %358 = vmatprep.subr.mxu0 0.0
    %359 = vmatpush1.msra.mxu0 0.0
    %360 = vmatprep.subr.mxu0 0.0
    %361 = vmatpush1.msra.mxu0 0.0
    %362 = vmatprep.subr.mxu0 0.0
    %363 = vmatpush1.msra.mxu0 0.0
    %364 = vmatprep.subr.mxu0 0.0
    %365 = vmatpush1.msra.mxu0 0.0
    %366 = vmatprep.subr.mxu0 0.0
    %367 = vmatpush1.msra.mxu0 0.0
    %368 = vmatprep.subr.mxu0 0.0
    %369 = vmatpush1.msra.mxu0 0.0
    %370 = vmatprep.mubr.f32.mxu0 0.0
    %371 = vmatmul.mubr.f32.gmra.mrb[0].mxu0 %v305
    %v372 = vpop.f32.mrb[0].mxu0
    %v373 = vadd.f32 0.0, %v372
    %v374 = vpop.f32.mrb[0].mxu0
    %375 = vdwg.mxu0
    %v376 = vadd.f32 %v184, %v373
    %v377 = vtanh.pop %v376
    %378 = vmatprep.subr.mxu0 0.0
    %379 = vmatpush1.msra.mxu0 %v217
    %380 = vmatprep.subr.mxu0 0.0
    %381 = vmatpush1.msra.mxu0 %v218
    %382 = vmatprep.subr.mxu0 0.0
    %383 = vmatpush1.msra.mxu0 %v219
    %384 = vmatprep.subr.mxu0 0.0
    %385 = vmatpush1.msra.mxu0 %v220
    %386 = vmatprep.subr.mxu0 0.0
    %387 = vmatpush1.msra.mxu0 %v221
    %388 = vmatprep.subr.mxu0 0.0
    %389 = vmatpush1.msra.mxu0 %v222
    %390 = vmatprep.subr.mxu0 0.0
    %391 = vmatpush1.msra.mxu0 %v223
    %392 = vmatprep.subr.mxu0 0.0
    %393 = vmatpush1.msra.mxu0 %v224
    %394 = vmatprep.subr.mxu0 0.0
    %395 = vmatpush1.msra.mxu0 %v225
    %396 = vmatprep.subr.mxu0 0.0
    %397 = vmatpush1.msra.mxu0 %v226
    %398 = vmatprep.subr.mxu0 0.0
    %399 = vmatpush1.msra.mxu0 %v227
    %400 = vmatprep.subr.mxu0 0.0
    %401 = vmatpush1.msra.mxu0 %v228
    %402 = vmatprep.subr.mxu0 0.0
    %403 = vmatpush1.msra.mxu0 %v229
    %404 = vmatprep.subr.mxu0 0.0
    %405 = vmatpush1.msra.mxu0 %v230
    %406 = vmatprep.subr.mxu0 0.0
    %407 = vmatpush1.msra.mxu0 %v231
    %408 = vmatprep.subr.mxu0 0.0
    %409 = vmatpush1.msra.mxu0 %v232
    %410 = vmatprep.subr.mxu0 0.0
    %411 = vmatpush1.msra.mxu0 0.0
    %412 = vmatprep.subr.mxu0 0.0
    %413 = vmatpush1.msra.mxu0 0.0
    %414 = vmatprep.subr.mxu0 0.0
    %415 = vmatpush1.msra.mxu0 0.0
    %416 = vmatprep.subr.mxu0 0.0
    %417 = vmatpush1.msra.mxu0 0.0
    %418 = vmatprep.subr.mxu0 0.0
    %419 = vmatpush1.msra.mxu0 0.0
    %420 = vmatprep.subr.mxu0 0.0
    %421 = vmatpush1.msra.mxu0 0.0
    %422 = vmatprep.subr.mxu0 0.0
    %423 = vmatpush1.msra.mxu0 0.0
    %424 = vmatprep.subr.mxu0 0.0
    %425 = vmatpush1.msra.mxu0 0.0
    %426 = vmatprep.subr.mxu0 0.0
    %427 = vmatpush1.msra.mxu0 0.0
    %428 = vmatprep.subr.mxu0 0.0
    %429 = vmatpush1.msra.mxu0 0.0
    %430 = vmatprep.subr.mxu0 0.0
    %431 = vmatpush1.msra.mxu0 0.0
    %432 = vmatprep.subr.mxu0 0.0
    %433 = vmatpush1.msra.mxu0 0.0
    %434 = vmatprep.subr.mxu0 0.0
    %435 = vmatpush1.msra.mxu0 0.0
    %436 = vmatprep.subr.mxu0 0.0
    %437 = vmatpush1.msra.mxu0 0.0
    %438 = vmatprep.subr.mxu0 0.0
    %439 = vmatpush1.msra.mxu0 0.0
    %440 = vmatprep.subr.mxu0 0.0
    %441 = vmatpush1.msra.mxu0 0.0
    %442 = vmatprep.mubr.f32.mxu0 0.0
    %443 = vmatmul.mubr.f32.gmra.mrb[0].mxu0 %v377
    %v444 = vpop.f32.mrb[0].mxu0
    %v445 = vadd.f32 0.0, %v444
    %v446 = vpop.f32.mrb[0].mxu0
    %447 = vdwg.mxu0
    %v448 = vadd.f32 %v189, %v445
    %v449 = vtanh.pop %v448
    %450 = vmatprep.subr.mxu0 0.0
    %451 = vmatpush1.msra.mxu0 %v217
    %452 = vmatprep.subr.mxu0 0.0
    %453 = vmatpush1.msra.mxu0 %v218
    %454 = vmatprep.subr.mxu0 0.0
    %455 = vmatpush1.msra.mxu0 %v219
    %456 = vmatprep.subr.mxu0 0.0
    %457 = vmatpush1.msra.mxu0 %v220
    %458 = vmatprep.subr.mxu0 0.0
    %459 = vmatpush1.msra.mxu0 %v221
    %460 = vmatprep.subr.mxu0 0.0
    %461 = vmatpush1.msra.mxu0 %v222
    %462 = vmatprep.subr.mxu0 0.0
    %463 = vmatpush1.msra.mxu0 %v223
    %464 = vmatprep.subr.mxu0 0.0
    %465 = vmatpush1.msra.mxu0 %v224
    %466 = vmatprep.subr.mxu0 0.0
    %467 = vmatpush1.msra.mxu0 %v225
    %468 = vmatprep.subr.mxu0 0.0
    %469 = vmatpush1.msra.mxu0 %v226
    %470 = vmatprep.subr.mxu0 0.0
    %471 = vmatpush1.msra.mxu0 %v227
    %472 = vmatprep.subr.mxu0 0.0
    %473 = vmatpush1.msra.mxu0 %v228
    %474 = vmatprep.subr.mxu0 0.0
    %475 = vmatpush1.msra.mxu0 %v229
    %476 = vmatprep.subr.mxu0 0.0
    %477 = vmatpush1.msra.mxu0 %v230
    %478 = vmatprep.subr.mxu0 0.0
    %479 = vmatpush1.msra.mxu0 %v231
    %480 = vmatprep.subr.mxu0 0.0
    %481 = vmatpush1.msra.mxu0 %v232
    %482 = vmatprep.subr.mxu0 0.0
    %483 = vmatpush1.msra.mxu0 0.0
    %484 = vmatprep.subr.mxu0 0.0
    %485 = vmatpush1.msra.mxu0 0.0
    %486 = vmatprep.subr.mxu0 0.0
    %487 = vmatpush1.msra.mxu0 0.0
    %488 = vmatprep.subr.mxu0 0.0
    %489 = vmatpush1.msra.mxu0 0.0
    %490 = vmatprep.subr.mxu0 0.0
    %491 = vmatpush1.msra.mxu0 0.0
    %492 = vmatprep.subr.mxu0 0.0
    %493 = vmatpush1.msra.mxu0 0.0
    %494 = vmatprep.subr.mxu0 0.0
    %495 = vmatpush1.msra.mxu0 0.0
    %496 = vmatprep.subr.mxu0 0.0
    %497 = vmatpush1.msra.mxu0 0.0
    %498 = vmatprep.subr.mxu0 0.0
    %499 = vmatpush1.msra.mxu0 0.0
    %500 = vmatprep.subr.mxu0 0.0
    %501 = vmatpush1.msra.mxu0 0.0
    %502 = vmatprep.subr.mxu0 0.0
    %503 = vmatpush1.msra.mxu0 0.0
    %504 = vmatprep.subr.mxu0 0.0
    %505 = vmatpush1.msra.mxu0 0.0
    %506 = vmatprep.subr.mxu0 0.0
    %507 = vmatpush1.msra.mxu0 0.0
    %508 = vmatprep.subr.mxu0 0.0
    %509 = vmatpush1.msra.mxu0 0.0
    %510 = vmatprep.subr.mxu0 0.0
    %511 = vmatpush1.msra.mxu0 0.0
    %512 = vmatprep.subr.mxu0 0.0
    %513 = vmatpush1.msra.mxu0 0.0
    %514 = vmatprep.mubr.f32.mxu0 0.0
    %515 = vmatmul.mubr.f32.gmra.mrb[0].mxu0 %v449
    %v516 = vpop.f32.mrb[0].mxu0
    %v517 = vadd.f32 0.0, %v516
    %v518 = vpop.f32.mrb[0].mxu0
    %519 = vdwg.mxu0
    %v520 = vadd.f32 %v194, %v517
    %v521 = vtanh.pop %v520
    %522 = vmatprep.subr.mxu0 0.0
    %523 = vmatpush1.msra.mxu0 %v217
    %524 = vmatprep.subr.mxu0 0.0
    %525 = vmatpush1.msra.mxu0 %v218
    %526 = vmatprep.subr.mxu0 0.0
    %527 = vmatpush1.msra.mxu0 %v219
    %528 = vmatprep.subr.mxu0 0.0
    %529 = vmatpush1.msra.mxu0 %v220
    %530 = vmatprep.subr.mxu0 0.0
    %531 = vmatpush1.msra.mxu0 %v221
    %532 = vmatprep.subr.mxu0 0.0
    %533 = vmatpush1.msra.mxu0 %v222
    %534 = vmatprep.subr.mxu0 0.0
    %535 = vmatpush1.msra.mxu0 %v223
    %536 = vmatprep.subr.mxu0 0.0
    %537 = vmatpush1.msra.mxu0 %v224
    %538 = vmatprep.subr.mxu0 0.0
    %539 = vmatpush1.msra.mxu0 %v225
    %540 = vmatprep.subr.mxu0 0.0
    %541 = vmatpush1.msra.mxu0 %v226
    %542 = vmatprep.subr.mxu0 0.0
    %543 = vmatpush1.msra.mxu0 %v227
    %544 = vmatprep.subr.mxu0 0.0
    %545 = vmatpush1.msra.mxu0 %v228
    %546 = vmatprep.subr.mxu0 0.0
    %547 = vmatpush1.msra.mxu0 %v229
    %548 = vmatprep.subr.mxu0 0.0
    %549 = vmatpush1.msra.mxu0 %v230
    %550 = vmatprep.subr.mxu0 0.0
    %551 = vmatpush1.msra.mxu0 %v231
    %552 = vmatprep.subr.mxu0 0.0
    %553 = vmatpush1.msra.mxu0 %v232
    %554 = vmatprep.subr.mxu0 0.0
    %555 = vmatpush1.msra.mxu0 0.0
    %556 = vmatprep.subr.mxu0 0.0
    %557 = vmatpush1.msra.mxu0 0.0
    %558 = vmatprep.subr.mxu0 0.0
    %559 = vmatpush1.msra.mxu0 0.0
    %560 = vmatprep.subr.mxu0 0.0
    %561 = vmatpush1.msra.mxu0 0.0
    %562 = vmatprep.subr.mxu0 0.0
    %563 = vmatpush1.msra.mxu0 0.0
    %564 = vmatprep.subr.mxu0 0.0
    %565 = vmatpush1.msra.mxu0 0.0
    %566 = vmatprep.subr.mxu0 0.0
    %567 = vmatpush1.msra.mxu0 0.0
    %568 = vmatprep.subr.mxu0 0.0
    %569 = vmatpush1.msra.mxu0 0.0
    %570 = vmatprep.subr.mxu0 0.0
    %571 = vmatpush1.msra.mxu0 0.0
    %572 = vmatprep.subr.mxu0 0.0
    %573 = vmatpush1.msra.mxu0 0.0
    %574 = vmatprep.subr.mxu0 0.0
    %575 = vmatpush1.msra.mxu0 0.0
    %576 = vmatprep.subr.mxu0 0.0
    %577 = vmatpush1.msra.mxu0 0.0
    %578 = vmatprep.subr.mxu0 0.0
    %579 = vmatpush1.msra.mxu0 0.0
    %580 = vmatprep.subr.mxu0 0.0
    %581 = vmatpush1.msra.mxu0 0.0
    %582 = vmatprep.subr.mxu0 0.0
    %583 = vmatpush1.msra.mxu0 0.0
    %584 = vmatprep.subr.mxu0 0.0
    %585 = vmatpush1.msra.mxu0 0.0
    %586 = vmatprep.mubr.f32.mxu0 0.0
    %587 = vmatmul.mubr.f32.gmra.mrb[0].mxu0 %v521
    %v588 = vpop.f32.mrb[0].mxu0
    %v589 = vadd.f32 0.0, %v588
    %v590 = vpop.f32.mrb[0].mxu0
    %591 = vdwg.mxu0
    %v592 = vadd.f32 %v199, %v589
    %v593 = vtanh.pop %v592
    %594 = vmatprep.subr.mxu0 0.0
    %595 = vmatpush1.msra.mxu0 %v217
    %596 = vmatprep.subr.mxu0 0.0
    %597 = vmatpush1.msra.mxu0 %v218
    %598 = vmatprep.subr.mxu0 0.0
    %599 = vmatpush1.msra.mxu0 %v219
    %600 = vmatprep.subr.mxu0 0.0
    %601 = vmatpush1.msra.mxu0 %v220
    %602 = vmatprep.subr.mxu0 0.0
    %603 = vmatpush1.msra.mxu0 %v221
    %604 = vmatprep.subr.mxu0 0.0
    %605 = vmatpush1.msra.mxu0 %v222
    %606 = vmatprep.subr.mxu0 0.0
    %607 = vmatpush1.msra.mxu0 %v223
    %608 = vmatprep.subr.mxu0 0.0
    %609 = vmatpush1.msra.mxu0 %v224
    %610 = vmatprep.subr.mxu0 0.0
    %611 = vmatpush1.msra.mxu0 %v225
    %612 = vmatprep.subr.mxu0 0.0
    %613 = vmatpush1.msra.mxu0 %v226
    %614 = vmatprep.subr.mxu0 0.0
    %615 = vmatpush1.msra.mxu0 %v227
    %616 = vmatprep.subr.mxu0 0.0
    %617 = vmatpush1.msra.mxu0 %v228
    %618 = vmatprep.subr.mxu0 0.0
    %619 = vmatpush1.msra.mxu0 %v229
    %620 = vmatprep.subr.mxu0 0.0
    %621 = vmatpush1.msra.mxu0 %v230
    %622 = vmatprep.subr.mxu0 0.0
    %623 = vmatpush1.msra.mxu0 %v231
    %624 = vmatprep.subr.mxu0 0.0
    %625 = vmatpush1.msra.mxu0 %v232
    %626 = vmatprep.subr.mxu0 0.0
    %627 = vmatpush1.msra.mxu0 0.0
    %628 = vmatprep.subr.mxu0 0.0
    %629 = vmatpush1.msra.mxu0 0.0
    %630 = vmatprep.subr.mxu0 0.0
    %631 = vmatpush1.msra.mxu0 0.0
    %632 = vmatprep.subr.mxu0 0.0
    %633 = vmatpush1.msra.mxu0 0.0
    %634 = vmatprep.subr.mxu0 0.0
    %635 = vmatpush1.msra.mxu0 0.0
    %636 = vmatprep.subr.mxu0 0.0
    %637 = vmatpush1.msra.mxu0 0.0
    %638 = vmatprep.subr.mxu0 0.0
    %639 = vmatpush1.msra.mxu0 0.0
    %640 = vmatprep.subr.mxu0 0.0
    %641 = vmatpush1.msra.mxu0 0.0
    %642 = vmatprep.subr.mxu0 0.0
    %643 = vmatpush1.msra.mxu0 0.0
    %644 = vmatprep.subr.mxu0 0.0
    %645 = vmatpush1.msra.mxu0 0.0
    %646 = vmatprep.subr.mxu0 0.0
    %647 = vmatpush1.msra.mxu0 0.0
    %648 = vmatprep.subr.mxu0 0.0
    %649 = vmatpush1.msra.mxu0 0.0
    %650 = vmatprep.subr.mxu0 0.0
    %651 = vmatpush1.msra.mxu0 0.0
    %652 = vmatprep.subr.mxu0 0.0
    %653 = vmatpush1.msra.mxu0 0.0
    %654 = vmatprep.subr.mxu0 0.0
    %655 = vmatpush1.msra.mxu0 0.0
    %656 = vmatprep.subr.mxu0 0.0
    %657 = vmatpush1.msra.mxu0 0.0
    %658 = vmatprep.mubr.f32.mxu0 0.0
    %659 = vmatmul.mubr.f32.gmra.mrb[0].mxu0 %v593
    %v660 = vpop.f32.mrb[0].mxu0
    %v661 = vadd.f32 0.0, %v660
    %v662 = vpop.f32.mrb[0].mxu0
    %663 = vdwg.mxu0
    %v664 = vadd.f32 %v204, %v661
    %v665 = vtanh.pop %v664
    %666 = vmatprep.subr.mxu0 0.0
    %667 = vmatpush1.msra.mxu0 %v217
    %668 = vmatprep.subr.mxu0 0.0
    %669 = vmatpush1.msra.mxu0 %v218
    %670 = vmatprep.subr.mxu0 0.0
    %671 = vmatpush1.msra.mxu0 %v219
    %672 = vmatprep.subr.mxu0 0.0
    %673 = vmatpush1.msra.mxu0 %v220
    %674 = vmatprep.subr.mxu0 0.0
    %675 = vmatpush1.msra.mxu0 %v221
    %676 = vmatprep.subr.mxu0 0.0
    %677 = vmatpush1.msra.mxu0 %v222
    %678 = vmatprep.subr.mxu0 0.0
    %679 = vmatpush1.msra.mxu0 %v223
    %680 = vmatprep.subr.mxu0 0.0
    %681 = vmatpush1.msra.mxu0 %v224
    %682 = vmatprep.subr.mxu0 0.0
    %683 = vmatpush1.msra.mxu0 %v225
    %684 = vmatprep.subr.mxu0 0.0
    %685 = vmatpush1.msra.mxu0 %v226
    %686 = vmatprep.subr.mxu0 0.0
    %687 = vmatpush1.msra.mxu0 %v227
    %688 = vmatprep.subr.mxu0 0.0
    %689 = vmatpush1.msra.mxu0 %v228
    %690 = vmatprep.subr.mxu0 0.0
    %691 = vmatpush1.msra.mxu0 %v229
    %692 = vmatprep.subr.mxu0 0.0
    %693 = vmatpush1.msra.mxu0 %v230
    %694 = vmatprep.subr.mxu0 0.0
    %695 = vmatpush1.msra.mxu0 %v231
    %696 = vmatprep.subr.mxu0 0.0
    %697 = vmatpush1.msra.mxu0 %v232
    %698 = vmatprep.subr.mxu0 0.0
    %699 = vmatpush1.msra.mxu0 0.0
    %700 = vmatprep.subr.mxu0 0.0
    %701 = vmatpush1.msra.mxu0 0.0
    %702 = vmatprep.subr.mxu0 0.0
    %703 = vmatpush1.msra.mxu0 0.0
    %704 = vmatprep.subr.mxu0 0.0
    %705 = vmatpush1.msra.mxu0 0.0
    %706 = vmatprep.subr.mxu0 0.0
    %707 = vmatpush1.msra.mxu0 0.0
    %708 = vmatprep.subr.mxu0 0.0
    %709 = vmatpush1.msra.mxu0 0.0
    %710 = vmatprep.subr.mxu0 0.0
    %711 = vmatpush1.msra.mxu0 0.0
    %712 = vmatprep.subr.mxu0 0.0
    %713 = vmatpush1.msra.mxu0 0.0
    %714 = vmatprep.subr.mxu0 0.0
    %715 = vmatpush1.msra.mxu0 0.0
    %716 = vmatprep.subr.mxu0 0.0
    %717 = vmatpush1.msra.mxu0 0.0
    %718 = vmatprep.subr.mxu0 0.0
    %719 = vmatpush1.msra.mxu0 0.0
    %720 = vmatprep.subr.mxu0 0.0
    %721 = vmatpush1.msra.mxu0 0.0
    %722 = vmatprep.subr.mxu0 0.0
    %723 = vmatpush1.msra.mxu0 0.0
    %724 = vmatprep.subr.mxu0 0.0
    %725 = vmatpush1.msra.mxu0 0.0
    %726 = vmatprep.subr.mxu0 0.0
    %727 = vmatpush1.msra.mxu0 0.0
    %728 = vmatprep.subr.mxu0 0.0
    %729 = vmatpush1.msra.mxu0 0.0
    %730 = vmatprep.mubr.f32.mxu0 0.0
    %731 = vmatmul.mubr.f32.gmra.mrb[0].mxu0 %v665
    %v732 = vpop.f32.mrb[0].mxu0
    %v733 = vadd.f32 0.0, %v732
    %v734 = vpop.f32.mrb[0].mxu0
    %735 = vdwg.mxu0
    %v736 = vadd.f32 %v209, %v733
    %v737 = vtanh.pop %v736
    %738 = vmatprep.subr.mxu0 0.0
    %739 = vmatpush1.msra.mxu0 %v217
    %740 = vmatprep.subr.mxu0 0.0
    %741 = vmatpush1.msra.mxu0 %v218
    %742 = vmatprep.subr.mxu0 0.0
    %743 = vmatpush1.msra.mxu0 %v219
    %744 = vmatprep.subr.mxu0 0.0
    %745 = vmatpush1.msra.mxu0 %v220
    %746 = vmatprep.subr.mxu0 0.0
    %747 = vmatpush1.msra.mxu0 %v221
    %748 = vmatprep.subr.mxu0 0.0
    %749 = vmatpush1.msra.mxu0 %v222
    %750 = vmatprep.subr.mxu0 0.0
    %751 = vmatpush1.msra.mxu0 %v223
    %752 = vmatprep.subr.mxu0 0.0
    %753 = vmatpush1.msra.mxu0 %v224
    %754 = vmatprep.subr.mxu0 0.0
    %755 = vmatpush1.msra.mxu0 %v225
    %756 = vmatprep.subr.mxu0 0.0
    %757 = vmatpush1.msra.mxu0 %v226
    %758 = vmatprep.subr.mxu0 0.0
    %759 = vmatpush1.msra.mxu0 %v227
    %760 = vmatprep.subr.mxu0 0.0
    %761 = vmatpush1.msra.mxu0 %v228
    %762 = vmatprep.subr.mxu0 0.0
    %763 = vmatpush1.msra.mxu0 %v229
    %764 = vmatprep.subr.mxu0 0.0
    %765 = vmatpush1.msra.mxu0 %v230
    %766 = vmatprep.subr.mxu0 0.0
    %767 = vmatpush1.msra.mxu0 %v231
    %768 = vmatprep.subr.mxu0 0.0
    %769 = vmatpush1.msra.mxu0 %v232
    %770 = vmatprep.subr.mxu0 0.0
    %771 = vmatpush1.msra.mxu0 0.0
    %772 = vmatprep.subr.mxu0 0.0
    %773 = vmatpush1.msra.mxu0 0.0
    %774 = vmatprep.subr.mxu0 0.0
    %775 = vmatpush1.msra.mxu0 0.0
    %776 = vmatprep.subr.mxu0 0.0
    %777 = vmatpush1.msra.mxu0 0.0
    %778 = vmatprep.subr.mxu0 0.0
    %779 = vmatpush1.msra.mxu0 0.0
    %780 = vmatprep.subr.mxu0 0.0
    %781 = vmatpush1.msra.mxu0 0.0
    %782 = vmatprep.subr.mxu0 0.0
    %783 = vmatpush1.msra.mxu0 0.0
    %784 = vmatprep.subr.mxu0 0.0
    %785 = vmatpush1.msra.mxu0 0.0
    %786 = vmatprep.subr.mxu0 0.0
    %787 = vmatpush1.msra.mxu0 0.0
    %788 = vmatprep.subr.mxu0 0.0
    %789 = vmatpush1.msra.mxu0 0.0
    %790 = vmatprep.subr.mxu0 0.0
    %791 = vmatpush1.msra.mxu0 0.0
    %792 = vmatprep.subr.mxu0 0.0
    %793 = vmatpush1.msra.mxu0 0.0
    %794 = vmatprep.subr.mxu0 0.0
    %795 = vmatpush1.msra.mxu0 0.0
    %796 = vmatprep.subr.mxu0 0.0
    %797 = vmatpush1.msra.mxu0 0.0
    %798 = vmatprep.subr.mxu0 0.0
    %799 = vmatpush1.msra.mxu0 0.0
    %800 = vmatprep.subr.mxu0 0.0
    %801 = vmatpush1.msra.mxu0 0.0
    %802 = vmatprep.mubr.f32.mxu0 0.0
    %803 = vmatmul.mubr.f32.gmra.mrb[0].mxu0 %v737
    %v804 = vpop.f32.mrb[0].mxu0
    %v805 = vadd.f32 0.0, %v804
    %v806 = vpop.f32.mrb[0].mxu0
    %807 = vdwg.mxu0
    %v808 = vadd.f32 %v214, %v805
    %v809 = vtanh.pop %v808
    %810 = vst [vmem:[#allocation2] sm:$0xff] %v809
    // Predicated region
    $region34: #{tpu_custom_call.1} parent=1 // pred_check
      %p811 = pneg %p59
    $region35: #{tpu_custom_call.1} parent=1 // pred_check_branch
      %813 = sbr.rel (%p811) target = $region37
    $region36: #{tpu_custom_call.1} parent=1 // pred_region
      %v814 = vld [vmem:[#allocation2] sm:$0xff]
      %815 = vst [vmem:[#allocation9] sm:$0xff] %v814
    $region37: #{tpu_custom_call.1} parent=1 // pred_fallthru
      _
    // Predicated region
    $region38: #{tpu_custom_call.1} parent=1 // pred_check
      _
    $region39: #{tpu_custom_call.1} parent=1 // pred_check_branch
      %817 = sbr.rel (0) target = $region41
    $region40: #{tpu_custom_call.1} parent=1 // pred_region
      %s819 = ssub.s32 128, 128
      %820 = vsyncadd [#allocation5], %s819
      %s822 = sshll.u32 [#allocation9], 4
      %s823 = int_to_ptr.vmem [resolvable:$true] %s822
      %825 = dma.vmem_to_hbm [thread:$0]  %s823, 128, %s4, [#allocation5]
    $region41: #{tpu_custom_call.1} parent=1 // pred_fallthru
      _
    // Predicated region
    $region42: #{tpu_custom_call.1} parent=1 // pred_check
      _
    $region43: #{tpu_custom_call.1} parent=1 // pred_check_branch
      %827 = sbr.rel (0) target = $region45
    $region44: #{tpu_custom_call.1} parent=1 // pred_region
      %828 = dma.done [#allocation5], 128
    $region45: #{tpu_custom_call.1} parent=1 // pred_fallthru
      _
    %829 = vsyncpa [#allocation4], 1
    %830 = vsyncpa [#allocation7], 1
    %831 = vsyncpa [#allocation5], 1

</llo_original>
